<compile_context>
chip_gen: v7x
topology: tpu7x:2x2x1
jax: 0.10.0
libtpu: 0.0.40
codegen_flags: <defaults>
</compile_context>

<pallas_src>
import functools

import numpy as np
import jax
import jax.numpy as jnp
from jax import lax
from jax.experimental import pallas as pl
from jax.experimental.pallas import tpu as pltpu


# ------------------------------ fused kernel ------------------------------

def _im2col(y, masks, H, W):
    """y: (C, H*W) channel-major, spatially lane-flattened.
    Returns (9*C, H*W): row block t (= ky*3+kx) holds y shifted by tap
    (ky-1, kx-1), zeroed outside the image (masks[t] is a 0/1 f32 row).
    Cross-image wraparound from the lane rotation is exactly the set of
    out-of-image positions, so the masks also make the rotation safe."""
    S = H * W
    parts = []
    t = 0
    for oy in (-1, 0, 1):
        for ox in (-1, 0, 1):
            if oy == 0 and ox == 0:
                parts.append(y)                                # center tap: no roll, no mask
            else:
                d = oy * W + ox
                shifted = pltpu.roll(y, shift=(-d) % S, axis=1)  # XLU lane rotate
                parts.append(shifted * masks[t:t + 1, :])        # (1,S) 0/1 broadcast
            t += 1
    return jnp.concatenate(parts, axis=0)                      # (9*C, S)


def _double_conv_kernel(x_ref, m_ref, w1_ref, b1_ref, w2_ref, b2_ref,
                        o_ref, *, H, W):
    x = x_ref[0]                 # (Cin, S)   spatial on lanes
    masks = m_ref[...]           # (9, S)     per-tap boundary masks

    # ---- conv1 (im2col matmul, BN scale pre-folded into W) + bias + ReLU ----
    p1 = _im2col(x, masks, H, W)                               # (9*Cin, S)
    y1 = jnp.dot(w1_ref[...], p1, preferred_element_type=jnp.float32)
    y1 = jnp.maximum(y1 + b1_ref[...], 0.0)                    # (Cmid, S)

    # ---- conv2 (im2col matmul) + bias + ReLU ----
    p2 = _im2col(y1, masks, H, W)                              # (9*Cmid, S)
    y2 = jnp.dot(w2_ref[...], p2, preferred_element_type=jnp.float32)
    y2 = jnp.maximum(y2 + b2_ref[...], 0.0)                    # (Cout, S)

    o_ref[0] = y2.astype(o_ref.dtype)                          # lane-dense store


def _make_tap_masks(H, W):
    """Static 0/1 validity masks for the 9 taps, flattened to (9, H*W)."""
    h = np.arange(H)[:, None]
    w = np.arange(W)[None, :]
    rows = []
    for oy in (-1, 0, 1):
        for ox in (-1, 0, 1):
            m = ((h + oy >= 0) & (h + oy < H) & (w + ox >= 0) & (w + ox < W))
            rows.append(m.reshape(-1))
    return jnp.asarray(np.stack(rows).astype(np.float32))


@jax.jit
def double_conv_forward(x_nchw, params):
    w1m, b1, w2m, b2 = params
    B, Cin, H, W = x_nchw.shape
    Cmid, Cout = w1m.shape[0], w2m.shape[0]
    S = H * W

    x_flat = x_nchw.reshape(B, Cin, S)          # metadata-only reshape
    masks = _make_tap_masks(H, W)               # (9, S) constant

    flops = 2 * B * S * (Cmid * 9 * Cin + Cout * 9 * Cmid)
    bytes_accessed = 4 * (B * Cin * S + B * Cout * S
                          + Cmid * 9 * Cin + Cout * 9 * Cmid + 9 * S)

    kernel = functools.partial(_double_conv_kernel, H=H, W=W)
    out = pl.pallas_call(
        kernel,
        out_shape=jax.ShapeDtypeStruct((B, Cout, S), x_nchw.dtype),
        grid=(B,),
        in_specs=[
            pl.BlockSpec((1, Cin, S), lambda b: (b, 0, 0)),
            pl.BlockSpec((9, S), lambda b: (0, 0)),
            pl.BlockSpec((Cmid, 9 * Cin), lambda b: (0, 0)),
            pl.BlockSpec((Cmid, 1), lambda b: (0, 0)),
            pl.BlockSpec((Cout, 9 * Cmid), lambda b: (0, 0)),
            pl.BlockSpec((Cout, 1), lambda b: (0, 0)),
        ],
        out_specs=pl.BlockSpec((1, Cout, S), lambda b: (b, 0, 0)),
        compiler_params=pltpu.CompilerParams(
            dimension_semantics=("parallel",)),
        cost_estimate=pl.CostEstimate(
            flops=flops, transcendentals=0, bytes_accessed=bytes_accessed),
    )(x_flat, masks, w1m, b1, w2m, b2)
    return out.reshape(B, Cout, H, W)           # metadata-only reshape


# --------------------------- parameter construction ---------------------------

def make_params(key, in_channels, out_channels, mid_channels=None):
    """DoubleConv params; eval-mode BN folded into the im2col weights + bias."""
    if mid_channels is None:
        mid_channels = out_channels
    eps = 1e-5
    ks = jax.random.split(key, 8)

    def conv_init(kw, kb, cin, cout):
        fan_in = cin * 9
        bound = 1.0 / jnp.sqrt(fan_in)
        w = jax.random.uniform(kw, (cout, cin, 3, 3), jnp.float32, -bound, bound)  # OIHW
        b = jax.random.uniform(kb, (cout,), jnp.float32, -bound, bound)
        return w, b

    w1, b1 = conv_init(ks[0], ks[1], in_channels, mid_channels)
    w2, b2 = conv_init(ks[2], ks[3], mid_channels, out_channels)
    g1 = jax.random.uniform(ks[4], (mid_channels,), jnp.float32, 0.5, 1.5)
    beta1 = jax.random.uniform(ks[5], (mid_channels,), jnp.float32, -0.5, 0.5)
    g2 = jax.random.uniform(ks[6], (out_channels,), jnp.float32, 0.5, 1.5)
    beta2 = jax.random.uniform(ks[7], (out_channels,), jnp.float32, -0.5, 0.5)

    # eval-mode BN (running_mean=0, running_var=1):
    #   y = gamma*(conv + b)/sqrt(1+eps) + beta == (scale*W)*x_patches + (b*scale + beta)
    s1 = g1 / jnp.sqrt(1.0 + eps)
    s2 = g2 / jnp.sqrt(1.0 + eps)
    fb1 = b1 * s1 + beta1
    fb2 = b2 * s2 + beta2

    # im2col weight layout: (Cout, 9*Cin), column index = (ky*3+kx)*Cin + ci,
    # with the BN scale folded into each output-channel row.
    w1m = jnp.transpose(w1, (0, 2, 3, 1)).reshape(mid_channels, 9 * in_channels)
    w2m = jnp.transpose(w2, (0, 2, 3, 1)).reshape(out_channels, 9 * mid_channels)
    w1m = w1m * s1[:, None]
    w2m = w2m * s2[:, None]

    kernel_params = (w1m, fb1.reshape(-1, 1), w2m, fb2.reshape(-1, 1))
    ref_params = (w1, s1, fb1, w2, s2, fb2)
    return kernel_params, ref_params


# --------------------------------- reference ---------------------------------

def double_conv_reference(x_nchw, ref_params):
    """Pure-JAX reference (lax.conv, NCHW/OIHW) for validation."""
    w1, s1, b1, w2, s2, b2 = ref_params

    def cbr(x, w, s, b):
        y = lax.conv_general_dilated(
            x, w, window_strides=(1, 1), padding=((1, 1), (1, 1)),
            dimension_numbers=('NCHW', 'OIHW', 'NCHW'))
        return jnp.maximum(y * s.reshape(1, -1, 1, 1) + b.reshape(1, -1, 1, 1), 0.0)

    return cbr(cbr(x_nchw, w1, s1, b1), w2, s2, b2)


if __name__ == "__main__":
    key = jax.random.PRNGKey(0)
    kx, kp = jax.random.split(key)

    in_channels, out_channels = 4, 8
    x = jax.random.normal(kx, (2, in_channels, 16, 16), jnp.float32)  # NCHW

    kernel_params, ref_params = make_params(kp, in_channels, out_channels)

    out = jax.block_until_ready(double_conv_forward(x, kernel_params))
    ref = jax.block_until_ready(double_conv_reference(x, ref_params))

    assert out.shape == (2, out_channels, 16, 16), out.shape
    max_err = float(jnp.max(jnp.abs(out - ref)))
    assert jnp.allclose(out, ref, atol=1e-4, rtol=1e-4), max_err
    print("KERNEL_OK")
</pallas_src>

<mosaic_0001>
module attributes {stable_mosaic.version = 11 : i64} {
  func.func @_double_conv_kernel(%arg0: i32, %arg1: memref<1x4x256xf32, #tpu.memory_space<vmem>>, %arg2: memref<9x256xf32, #tpu.memory_space<vmem>>, %arg3: memref<8x36xf32, #tpu.memory_space<vmem>>, %arg4: memref<8x1xf32, #tpu.memory_space<vmem>>, %arg5: memref<8x72xf32, #tpu.memory_space<vmem>>, %arg6: memref<8x1xf32, #tpu.memory_space<vmem>>, %arg7: memref<1x8x256xf32, #tpu.memory_space<vmem>>) attributes {dimension_semantics = [#tpu.dimension_semantics<parallel>], iteration_bounds = array<i64: 2>, scalar_prefetch = 0 : i64, scratch_operands = 0 : i64, tpu.core_type = #tpu.core_type<tc>, window_params = [{transform_indices = @transform_0, window_bounds = array<i64: 1, 4, 256>}, {pipeline_mode = #tpu.pipeline_mode<synchronous>, transform_indices = @transform_1, window_bounds = array<i64: 9, 256>}, {pipeline_mode = #tpu.pipeline_mode<synchronous>, transform_indices = @transform_2, window_bounds = array<i64: 8, 36>}, {pipeline_mode = #tpu.pipeline_mode<synchronous>, transform_indices = @transform_3, window_bounds = array<i64: 8, 1>}, {pipeline_mode = #tpu.pipeline_mode<synchronous>, transform_indices = @transform_4, window_bounds = array<i64: 8, 72>}, {pipeline_mode = #tpu.pipeline_mode<synchronous>, transform_indices = @transform_5, window_bounds = array<i64: 8, 1>}, {transform_indices = @transform_6, window_bounds = array<i64: 1, 8, 256>}]} {
    %c0 = arith.constant 0 : index
    %c0_0 = arith.constant 0 : index
    %c0_1 = arith.constant 0 : index
    %0 = vector.load %arg1[%c0, %c0_0, %c0_1] : memref<1x4x256xf32, #tpu.memory_space<vmem>>, vector<1x4x256xf32>
    %1 = vector.shape_cast %0 : vector<1x4x256xf32> to vector<4x256xf32>
    %c0_2 = arith.constant 0 : index
    %c0_3 = arith.constant 0 : index
    %2 = vector.load %arg2[%c0_2, %c0_3] : memref<9x256xf32, #tpu.memory_space<vmem>>, vector<9x256xf32>
    %c17_i32 = arith.constant 17 : i32
    %3 = tpu.dynamic_rotate %1 by %c17_i32 dim 1 : vector<4x256xf32>, i32 -> vector<4x256xf32>
    %4 = vector.extract_strided_slice %2 {offsets = [0, 0], sizes = [1, 256], strides = [1, 1]} : vector<9x256xf32> to vector<1x256xf32>
    %5 = vector.broadcast %4 : vector<1x256xf32> to vector<4x256xf32>
    %6 = arith.mulf %3, %5 : vector<4x256xf32>
    %c16_i32 = arith.constant 16 : i32
    %7 = tpu.dynamic_rotate %1 by %c16_i32 dim 1 : vector<4x256xf32>, i32 -> vector<4x256xf32>
    %8 = vector.extract_strided_slice %2 {offsets = [1, 0], sizes = [1, 256], strides = [1, 1]} : vector<9x256xf32> to vector<1x256xf32>
    %9 = vector.broadcast %8 : vector<1x256xf32> to vector<4x256xf32>
    %10 = arith.mulf %7, %9 : vector<4x256xf32>
    %c15_i32 = arith.constant 15 : i32
    %11 = tpu.dynamic_rotate %1 by %c15_i32 dim 1 : vector<4x256xf32>, i32 -> vector<4x256xf32>
    %12 = vector.extract_strided_slice %2 {offsets = [2, 0], sizes = [1, 256], strides = [1, 1]} : vector<9x256xf32> to vector<1x256xf32>
    %13 = vector.broadcast %12 : vector<1x256xf32> to vector<4x256xf32>
    %14 = arith.mulf %11, %13 : vector<4x256xf32>
    %c1_i32 = arith.constant 1 : i32
    %15 = tpu.dynamic_rotate %1 by %c1_i32 dim 1 : vector<4x256xf32>, i32 -> vector<4x256xf32>
    %16 = vector.extract_strided_slice %2 {offsets = [3, 0], sizes = [1, 256], strides = [1, 1]} : vector<9x256xf32> to vector<1x256xf32>
    %17 = vector.broadcast %16 : vector<1x256xf32> to vector<4x256xf32>
    %18 = arith.mulf %15, %17 : vector<4x256xf32>
    %c255_i32 = arith.constant 255 : i32
    %19 = tpu.dynamic_rotate %1 by %c255_i32 dim 1 : vector<4x256xf32>, i32 -> vector<4x256xf32>
    %20 = vector.extract_strided_slice %2 {offsets = [5, 0], sizes = [1, 256], strides = [1, 1]} : vector<9x256xf32> to vector<1x256xf32>
    %21 = vector.broadcast %20 : vector<1x256xf32> to vector<4x256xf32>
    %22 = arith.mulf %19, %21 : vector<4x256xf32>
    %c241_i32 = arith.constant 241 : i32
    %23 = tpu.dynamic_rotate %1 by %c241_i32 dim 1 : vector<4x256xf32>, i32 -> vector<4x256xf32>
    %24 = vector.extract_strided_slice %2 {offsets = [6, 0], sizes = [1, 256], strides = [1, 1]} : vector<9x256xf32> to vector<1x256xf32>
    %25 = vector.broadcast %24 : vector<1x256xf32> to vector<4x256xf32>
    %26 = arith.mulf %23, %25 : vector<4x256xf32>
    %c240_i32 = arith.constant 240 : i32
    %27 = tpu.dynamic_rotate %1 by %c240_i32 dim 1 : vector<4x256xf32>, i32 -> vector<4x256xf32>
    %28 = vector.extract_strided_slice %2 {offsets = [7, 0], sizes = [1, 256], strides = [1, 1]} : vector<9x256xf32> to vector<1x256xf32>
    %29 = vector.broadcast %28 : vector<1x256xf32> to vector<4x256xf32>
    %30 = arith.mulf %27, %29 : vector<4x256xf32>
    %c239_i32 = arith.constant 239 : i32
    %31 = tpu.dynamic_rotate %1 by %c239_i32 dim 1 : vector<4x256xf32>, i32 -> vector<4x256xf32>
    %32 = vector.extract_strided_slice %2 {offsets = [8, 0], sizes = [1, 256], strides = [1, 1]} : vector<9x256xf32> to vector<1x256xf32>
    %33 = vector.broadcast %32 : vector<1x256xf32> to vector<4x256xf32>
    %34 = arith.mulf %31, %33 : vector<4x256xf32>
    %35 = tpu.concatenate %6, %10, %14, %18, %1, %22, %26, %30, %34 in 0 : vector<4x256xf32>, vector<4x256xf32>, vector<4x256xf32>, vector<4x256xf32>, vector<4x256xf32>, vector<4x256xf32>, vector<4x256xf32>, vector<4x256xf32>, vector<4x256xf32> -> vector<36x256xf32>
    %c0_4 = arith.constant 0 : index
    %c0_5 = arith.constant 0 : index
    %36 = vector.load %arg3[%c0_4, %c0_5] : memref<8x36xf32, #tpu.memory_space<vmem>>, vector<8x36xf32>
    %cst = arith.constant dense<0.000000e+00> : vector<8x256xf32>
    %37 = tpu.matmul %36, %35, %cst {dimension_numbers = #tpu.dot_dimension_numbers<[1], [0], [0], [1], [0, 0, 1, 1], [], []>} : vector<8x36xf32>, vector<36x256xf32>, vector<8x256xf32> -> vector<8x256xf32>
    %c0_6 = arith.constant 0 : index
    %c0_7 = arith.constant 0 : index
    %38 = vector.load %arg4[%c0_6, %c0_7] : memref<8x1xf32, #tpu.memory_space<vmem>>, vector<8x1xf32>
    %39 = vector.broadcast %38 : vector<8x1xf32> to vector<8x256xf32>
    %40 = arith.addf %37, %39 : vector<8x256xf32>
    %cst_8 = arith.constant 0.000000e+00 : f32
    %41 = vector.broadcast %cst_8 : f32 to vector<8x256xf32>
    %42 = arith.maximumf %40, %41 : vector<8x256xf32>
    %c17_i32_9 = arith.constant 17 : i32
    %43 = tpu.dynamic_rotate %42 by %c17_i32_9 dim 1 : vector<8x256xf32>, i32 -> vector<8x256xf32>
    %44 = vector.extract_strided_slice %2 {offsets = [0, 0], sizes = [1, 256], strides = [1, 1]} : vector<9x256xf32> to vector<1x256xf32>
    %45 = vector.broadcast %44 : vector<1x256xf32> to vector<8x256xf32>
    %46 = arith.mulf %43, %45 : vector<8x256xf32>
    %c16_i32_10 = arith.constant 16 : i32
    %47 = tpu.dynamic_rotate %42 by %c16_i32_10 dim 1 : vector<8x256xf32>, i32 -> vector<8x256xf32>
    %48 = vector.extract_strided_slice %2 {offsets = [1, 0], sizes = [1, 256], strides = [1, 1]} : vector<9x256xf32> to vector<1x256xf32>
    %49 = vector.broadcast %48 : vector<1x256xf32> to vector<8x256xf32>
    %50 = arith.mulf %47, %49 : vector<8x256xf32>
    %c15_i32_11 = arith.constant 15 : i32
    %51 = tpu.dynamic_rotate %42 by %c15_i32_11 dim 1 : vector<8x256xf32>, i32 -> vector<8x256xf32>
    %52 = vector.extract_strided_slice %2 {offsets = [2, 0], sizes = [1, 256], strides = [1, 1]} : vector<9x256xf32> to vector<1x256xf32>
    %53 = vector.broadcast %52 : vector<1x256xf32> to vector<8x256xf32>
    %54 = arith.mulf %51, %53 : vector<8x256xf32>
    %c1_i32_12 = arith.constant 1 : i32
    %55 = tpu.dynamic_rotate %42 by %c1_i32_12 dim 1 : vector<8x256xf32>, i32 -> vector<8x256xf32>
    %56 = vector.extract_strided_slice %2 {offsets = [3, 0], sizes = [1, 256], strides = [1, 1]} : vector<9x256xf32> to vector<1x256xf32>
    %57 = vector.broadcast %56 : vector<1x256xf32> to vector<8x256xf32>
    %58 = arith.mulf %55, %57 : vector<8x256xf32>
    %c255_i32_13 = arith.constant 255 : i32
    %59 = tpu.dynamic_rotate %42 by %c255_i32_13 dim 1 : vector<8x256xf32>, i32 -> vector<8x256xf32>
    %60 = vector.extract_strided_slice %2 {offsets = [5, 0], sizes = [1, 256], strides = [1, 1]} : vector<9x256xf32> to vector<1x256xf32>
    %61 = vector.broadcast %60 : vector<1x256xf32> to vector<8x256xf32>
    %62 = arith.mulf %59, %61 : vector<8x256xf32>
    %c241_i32_14 = arith.constant 241 : i32
    %63 = tpu.dynamic_rotate %42 by %c241_i32_14 dim 1 : vector<8x256xf32>, i32 -> vector<8x256xf32>
    %64 = vector.extract_strided_slice %2 {offsets = [6, 0], sizes = [1, 256], strides = [1, 1]} : vector<9x256xf32> to vector<1x256xf32>
    %65 = vector.broadcast %64 : vector<1x256xf32> to vector<8x256xf32>
    %66 = arith.mulf %63, %65 : vector<8x256xf32>
    %c240_i32_15 = arith.constant 240 : i32
    %67 = tpu.dynamic_rotate %42 by %c240_i32_15 dim 1 : vector<8x256xf32>, i32 -> vector<8x256xf32>
    %68 = vector.extract_strided_slice %2 {offsets = [7, 0], sizes = [1, 256], strides = [1, 1]} : vector<9x256xf32> to vector<1x256xf32>
    %69 = vector.broadcast %68 : vector<1x256xf32> to vector<8x256xf32>
    %70 = arith.mulf %67, %69 : vector<8x256xf32>
    %c239_i32_16 = arith.constant 239 : i32
    %71 = tpu.dynamic_rotate %42 by %c239_i32_16 dim 1 : vector<8x256xf32>, i32 -> vector<8x256xf32>
    %72 = vector.extract_strided_slice %2 {offsets = [8, 0], sizes = [1, 256], strides = [1, 1]} : vector<9x256xf32> to vector<1x256xf32>
    %73 = vector.broadcast %72 : vector<1x256xf32> to vector<8x256xf32>
    %74 = arith.mulf %71, %73 : vector<8x256xf32>
    %75 = tpu.concatenate %46, %50, %54, %58, %42, %62, %66, %70, %74 in 0 : vector<8x256xf32>, vector<8x256xf32>, vector<8x256xf32>, vector<8x256xf32>, vector<8x256xf32>, vector<8x256xf32>, vector<8x256xf32>, vector<8x256xf32>, vector<8x256xf32> -> vector<72x256xf32>
    %c0_17 = arith.constant 0 : index
    %c0_18 = arith.constant 0 : index
    %76 = vector.load %arg5[%c0_17, %c0_18] : memref<8x72xf32, #tpu.memory_space<vmem>>, vector<8x72xf32>
    %cst_19 = arith.constant dense<0.000000e+00> : vector<8x256xf32>
    %77 = tpu.matmul %76, %75, %cst_19 {dimension_numbers = #tpu.dot_dimension_numbers<[1], [0], [0], [1], [0, 0, 1, 1], [], []>} : vector<8x72xf32>, vector<72x256xf32>, vector<8x256xf32> -> vector<8x256xf32>
    %c0_20 = arith.constant 0 : index
    %c0_21 = arith.constant 0 : index
    %78 = vector.load %arg6[%c0_20, %c0_21] : memref<8x1xf32, #tpu.memory_space<vmem>>, vector<8x1xf32>
    %79 = vector.broadcast %78 : vector<8x1xf32> to vector<8x256xf32>
    %80 = arith.addf %77, %79 : vector<8x256xf32>
    %cst_22 = arith.constant 0.000000e+00 : f32
    %81 = vector.broadcast %cst_22 : f32 to vector<8x256xf32>
    %82 = arith.maximumf %80, %81 : vector<8x256xf32>
    %c0_23 = arith.constant 0 : index
    %c0_24 = arith.constant 0 : index
    %c0_25 = arith.constant 0 : index
    %83 = vector.load %arg7[%c0_23, %c0_24, %c0_25] : memref<1x8x256xf32, #tpu.memory_space<vmem>>, vector<1x8x256xf32>
    %84 = vector.shape_cast %83 : vector<1x8x256xf32> to vector<8x256xf32>
    %85 = vector.shape_cast %82 : vector<8x256xf32> to vector<1x8x256xf32>
    tpu.vector_store %arg7[%c0_23, %c0_24, %c0_25], %85 {strides = array<i32>} : memref<1x8x256xf32, #tpu.memory_space<vmem>>, vector<1x8x256xf32>,
    return
  }
  func.func @transform_0(%arg0: i32) -> (i32, i32, i32) {
    %c0_i32 = arith.constant 0 : i32
    %c0_i32_0 = arith.constant 0 : i32
    %c0_i32_1 = arith.constant 0 : i32
    return %arg0, %c0_i32, %c0_i32_0 : i32, i32, i32
  }
  func.func @transform_1(%arg0: i32) -> (i32, i32) {
    %c0_i32 = arith.constant 0 : i32
    %c0_i32_0 = arith.constant 0 : i32
    %c0_i32_1 = arith.constant 0 : i32
    return %c0_i32, %c0_i32_0 : i32, i32
  }
  func.func @transform_2(%arg0: i32) -> (i32, i32) {
    %c0_i32 = arith.constant 0 : i32
    %c0_i32_0 = arith.constant 0 : i32
    %c0_i32_1 = arith.constant 0 : i32
    return %c0_i32, %c0_i32_0 : i32, i32
  }
  func.func @transform_3(%arg0: i32) -> (i32, i32) {
    %c0_i32 = arith.constant 0 : i32
    %c0_i32_0 = arith.constant 0 : i32
    %c0_i32_1 = arith.constant 0 : i32
    return %c0_i32, %c0_i32_0 : i32, i32
  }
  func.func @transform_4(%arg0: i32) -> (i32, i32) {
    %c0_i32 = arith.constant 0 : i32
    %c0_i32_0 = arith.constant 0 : i32
    %c0_i32_1 = arith.constant 0 : i32
    return %c0_i32, %c0_i32_0 : i32, i32
  }
  func.func @transform_5(%arg0: i32) -> (i32, i32) {
    %c0_i32 = arith.constant 0 : i32
    %c0_i32_0 = arith.constant 0 : i32
    %c0_i32_1 = arith.constant 0 : i32
    return %c0_i32, %c0_i32_0 : i32, i32
  }
  func.func @transform_6(%arg0: i32) -> (i32, i32, i32) {
    %c0_i32 = arith.constant 0 : i32
    %c0_i32_0 = arith.constant 0 : i32
    %c0_i32_1 = arith.constant 0 : i32
    return %arg0, %c0_i32, %c0_i32_0 : i32, i32, i32
  }
}

</mosaic_0001>

<llo_original>
// kernel: double_conv_forward.1
$region0: #{double_conv_forward.1}
  #allocation0 [shape = 'u32[]', space=smem, size = 0x4, offset = 0x4, fixed_abs, tag = 'smem constant byte address 0x4 - core index']
  #allocation1 [shape = 'u32[144,128]{1,0:T(1,128)}', space=vmem, size = 0x12000, scoped, tag = 'internal scratch']
  %s0 = inlined_call_operand.vmem [shape: f32[2,4,256], index: 0, kind: input, shape index: {}]
  %s1 = inlined_call_operand.vmem [shape: f32[9,256], index: 1, kind: input, shape index: {}]
  %s2 = inlined_call_operand.vmem [shape: f32[8,36], index: 2, kind: input, shape index: {}]
  %s3 = inlined_call_operand.vmem [shape: f32[8,1], index: 3, kind: input, shape index: {}]
  %s4 = inlined_call_operand.vmem [shape: f32[8,72], index: 4, kind: input, shape index: {}]
  %s5 = inlined_call_operand.vmem [shape: f32[8,1], index: 5, kind: input, shape index: {}]
  %s6 = inlined_call_operand.vmem [shape: f32[2,8,256], index: 6, kind: output, shape index: {}]
  %s7 = sld [smem:[#allocation0]]
  $region57: #{double_conv_forward.1} parent=0
    _
  %s9 = ssub.s32 1, %s7
  %s10 = scalar_select 0, %s9, %s7
  loop: start=0, step=1, limit=4
  $region2: #{double_conv_forward.1} parent=0 // loop_pre_header
    _
  $region3: #{double_conv_forward.1} parent=0 // loop_header
    %s12 = sphi 0, %s16
    %p13 = scmp.ge.s32.totalorder %s12, 4
    %s22 = sphi 0, %s24
    %s25 = sphi 0, %s22
    %s26 = sphi 0, %s25
    %s42 = sphi 0, %s26
    %s46 = sphi 0, %s46
    %s48 = sphi 0, %s46
    %s49 = sphi 0, %s48
    %s63 = sphi 0, %s49
    %s67 = sphi 0, %s67
    %s69 = sphi 0, %s67
    %s70 = sphi 0, %s69
    %s84 = sphi 0, %s70
    %s88 = sphi 0, %s88
    %s90 = sphi 0, %s88
    %s91 = sphi 0, %s90
    %s105 = sphi 0, %s91
    %s109 = sphi 0, %s109
    %s111 = sphi 0, %s109
    %s112 = sphi 0, %s111
    %s126 = sphi 0, %s112
    %s130 = sphi 0, %s130
    %s132 = sphi 0, %s130
    %s133 = sphi 0, %s132
    %s147 = sphi 0, %s133
    %s153 = sphi 0, %s155
    %s156 = sphi 0, %s153
    %s157 = sphi 0, %s156
    %s173 = sphi 0, %s157
  $region4: #{double_conv_forward.1} parent=0 // loop_header_branch
    %15 = sbr.rel (%p13) target = $region8
  $region5: #{double_conv_forward.1} parent=0 // loop_body
    %s17 = ssub.s32 %s12, 1
    %s18 = ssub.s32 %s12, 2
    %s19 = sadd.s32 %s12, 1
    %s20 = ssub.s32 %s12, %s19
    %p21 = scmp.eq.s32.totalorder %s20, 0
    %s23 = sadd.s32 %s22, 1
    %s24 = scalar_select %p21, %s22, %s23
    %p27 = pneg %p21
    %p28 = scmp.eq.s32.totalorder %s12, 1
    %p29 = por %p27, %p28
    %p30 = scmp.ne.s32.totalorder %s22, %s25
    %p31 = scmp.eq.s32.totalorder %s12, 0
    %p32 = por %p30, %p31
    %p33 = scmp.ne.s32.totalorder %s22, %s25
    %p34 = scmp.eq.s32.totalorder %s17, 1
    %p35 = por %p33, %p34
    %p36 = scmp.ne.s32.totalorder %s25, %s26
    %p37 = scmp.eq.s32.totalorder %s17, 0
    %p38 = por %p36, %p37
    %p39 = scmp.ne.s32.totalorder %s25, %s26
    %p40 = scmp.eq.s32.totalorder %s18, 1
    %p41 = por %p39, %p40
    %p43 = scmp.ne.s32.totalorder %s26, %s42
    %p44 = scmp.eq.s32.totalorder %s18, 0
    %p45 = por %p43, %p44
    %s47 = sadd.s32 %s46, 1
    %p50 = scmp.eq.s32.totalorder %s12, 1
    %p51 = scmp.ne.s32.totalorder %s46, %s48
    %p52 = scmp.eq.s32.totalorder %s12, 0
    %p53 = por %p51, %p52
    %p54 = scmp.ne.s32.totalorder %s46, %s48
    %p55 = scmp.eq.s32.totalorder %s17, 1
    %p56 = por %p54, %p55
    %p57 = scmp.ne.s32.totalorder %s48, %s49
    %p58 = scmp.eq.s32.totalorder %s17, 0
    %p59 = por %p57, %p58
    %p60 = scmp.ne.s32.totalorder %s48, %s49
    %p61 = scmp.eq.s32.totalorder %s18, 1
    %p62 = por %p60, %p61
    %p64 = scmp.ne.s32.totalorder %s49, %s63
    %p65 = scmp.eq.s32.totalorder %s18, 0
    %p66 = por %p64, %p65
    %s68 = sadd.s32 %s67, 1
    %p71 = scmp.eq.s32.totalorder %s12, 1
    %p72 = scmp.ne.s32.totalorder %s67, %s69
    %p73 = scmp.eq.s32.totalorder %s12, 0
    %p74 = por %p72, %p73
    %p75 = scmp.ne.s32.totalorder %s67, %s69
    %p76 = scmp.eq.s32.totalorder %s17, 1
    %p77 = por %p75, %p76
    %p78 = scmp.ne.s32.totalorder %s69, %s70
    %p79 = scmp.eq.s32.totalorder %s17, 0
    %p80 = por %p78, %p79
    %p81 = scmp.ne.s32.totalorder %s69, %s70
    %p82 = scmp.eq.s32.totalorder %s18, 1
    %p83 = por %p81, %p82
    %p85 = scmp.ne.s32.totalorder %s70, %s84
    %p86 = scmp.eq.s32.totalorder %s18, 0
    %p87 = por %p85, %p86
    %s89 = sadd.s32 %s88, 1
    %p92 = scmp.eq.s32.totalorder %s12, 1
    %p93 = scmp.ne.s32.totalorder %s88, %s90
    %p94 = scmp.eq.s32.totalorder %s12, 0
    %p95 = por %p93, %p94
    %p96 = scmp.ne.s32.totalorder %s88, %s90
    %p97 = scmp.eq.s32.totalorder %s17, 1
    %p98 = por %p96, %p97
    %p99 = scmp.ne.s32.totalorder %s90, %s91
    %p100 = scmp.eq.s32.totalorder %s17, 0
    %p101 = por %p99, %p100
    %p102 = scmp.ne.s32.totalorder %s90, %s91
    %p103 = scmp.eq.s32.totalorder %s18, 1
    %p104 = por %p102, %p103
    %p106 = scmp.ne.s32.totalorder %s91, %s105
    %p107 = scmp.eq.s32.totalorder %s18, 0
    %p108 = por %p106, %p107
    %s110 = sadd.s32 %s109, 1
    %p113 = scmp.eq.s32.totalorder %s12, 1
    %p114 = scmp.ne.s32.totalorder %s109, %s111
    %p115 = scmp.eq.s32.totalorder %s12, 0
    %p116 = por %p114, %p115
    %p117 = scmp.ne.s32.totalorder %s109, %s111
    %p118 = scmp.eq.s32.totalorder %s17, 1
    %p119 = por %p117, %p118
    %p120 = scmp.ne.s32.totalorder %s111, %s112
    %p121 = scmp.eq.s32.totalorder %s17, 0
    %p122 = por %p120, %p121
    %p123 = scmp.ne.s32.totalorder %s111, %s112
    %p124 = scmp.eq.s32.totalorder %s18, 1
    %p125 = por %p123, %p124
    %p127 = scmp.ne.s32.totalorder %s112, %s126
    %p128 = scmp.eq.s32.totalorder %s18, 0
    %p129 = por %p127, %p128
    %s131 = sadd.s32 %s130, 1
    %p134 = scmp.eq.s32.totalorder %s12, 1
    %p135 = scmp.ne.s32.totalorder %s130, %s132
    %p136 = scmp.eq.s32.totalorder %s12, 0
    %p137 = por %p135, %p136
    %p138 = scmp.ne.s32.totalorder %s130, %s132
    %p139 = scmp.eq.s32.totalorder %s17, 1
    %p140 = por %p138, %p139
    %p141 = scmp.ne.s32.totalorder %s132, %s133
    %p142 = scmp.eq.s32.totalorder %s17, 0
    %p143 = por %p141, %p142
    %p144 = scmp.ne.s32.totalorder %s132, %s133
    %p145 = scmp.eq.s32.totalorder %s18, 1
    %p146 = por %p144, %p145
    %p148 = scmp.ne.s32.totalorder %s133, %s147
    %p149 = scmp.eq.s32.totalorder %s18, 0
    %p150 = por %p148, %p149
    %s151 = ssub.s32 %s12, %s19
    %p152 = scmp.eq.s32.totalorder %s151, 0
    %s154 = sadd.s32 %s153, 1
    %s155 = scalar_select %p152, %s153, %s154
    %p158 = pneg %p152
    %p159 = scmp.eq.s32.totalorder %s12, 1
    %p160 = por %p158, %p159
    %p161 = scmp.ne.s32.totalorder %s153, %s156
    %p162 = scmp.eq.s32.totalorder %s12, 0
    %p163 = por %p161, %p162
    %p164 = scmp.ne.s32.totalorder %s153, %s156
    %p165 = scmp.eq.s32.totalorder %s17, 1
    %p166 = por %p164, %p165
    %p167 = scmp.ne.s32.totalorder %s156, %s157
    %p168 = scmp.eq.s32.totalorder %s17, 0
    %p169 = por %p167, %p168
    %p170 = scmp.ne.s32.totalorder %s156, %s157
    %p171 = scmp.eq.s32.totalorder %s18, 1
    %p172 = por %p170, %p171
    %p174 = scmp.ne.s32.totalorder %s157, %s173
    %p175 = scmp.eq.s32.totalorder %s18, 0
    %p176 = por %p174, %p175
    %p177 = scmp.le.s32.totalorder 1, %s12
    %p178 = scmp.lt.s32.totalorder %s12, 3
    %p179 = pnand %p177, %p178
    %p180 = pneg %p179
    // Predicated region
    $region9: #{double_conv_forward.1} parent=5 // pred_check
      _
    $region10: #{double_conv_forward.1} parent=5 // pred_check_branch
      %182 = sbr.rel (%p179) target = $region12
    $region11: #{double_conv_forward.1} parent=5 // pred_region
      %s183 = ssub.s32 %s12, 1
      // Predicated region
      $region13: #{double_conv_forward.1} parent=11 // pred_check
        %p184 = pneg %p59
      $region14: #{double_conv_forward.1} parent=11 // pred_check_branch
        %186 = sbr.rel (%p184) target = $region16
      $region15: #{double_conv_forward.1} parent=11 // pred_region
        _
      $region16: #{double_conv_forward.1} parent=11 // pred_fallthru
        _
      // Predicated region
      $region17: #{double_conv_forward.1} parent=11 // pred_check
        %p187 = pneg %p80
      $region18: #{double_conv_forward.1} parent=11 // pred_check_branch
        %189 = sbr.rel (%p187) target = $region20
      $region19: #{double_conv_forward.1} parent=11 // pred_region
        _
      $region20: #{double_conv_forward.1} parent=11 // pred_fallthru
        _
      // Predicated region
      $region21: #{double_conv_forward.1} parent=11 // pred_check
        %p190 = pneg %p101
      $region22: #{double_conv_forward.1} parent=11 // pred_check_branch
        %192 = sbr.rel (%p190) target = $region24
      $region23: #{double_conv_forward.1} parent=11 // pred_region
        _
      $region24: #{double_conv_forward.1} parent=11 // pred_fallthru
        _
      // Predicated region
      $region25: #{double_conv_forward.1} parent=11 // pred_check
        %p193 = pneg %p122
      $region26: #{double_conv_forward.1} parent=11 // pred_check_branch
        %195 = sbr.rel (%p193) target = $region28
      $region27: #{double_conv_forward.1} parent=11 // pred_region
        _
      $region28: #{double_conv_forward.1} parent=11 // pred_fallthru
        _
      // Predicated region
      $region29: #{double_conv_forward.1} parent=11 // pred_check
        %p196 = pneg %p143
      $region30: #{double_conv_forward.1} parent=11 // pred_check_branch
        %198 = sbr.rel (%p196) target = $region32
      $region31: #{double_conv_forward.1} parent=11 // pred_region
        _
      $region32: #{double_conv_forward.1} parent=11 // pred_fallthru
        _
    $region12: #{double_conv_forward.1} parent=5 // pred_fallthru
      _
    %p199 = scmp.lt.s32.totalorder %s12, 2
    // Predicated region
    $region33: #{double_conv_forward.1} parent=5 // pred_check
      %p200 = pneg %p199
    $region34: #{double_conv_forward.1} parent=5 // pred_check_branch
      %202 = sbr.rel (%p200) target = $region36
    $region35: #{double_conv_forward.1} parent=5 // pred_region
      // Predicated region
      $region37: #{double_conv_forward.1} parent=35 // pred_check
        %p203 = pneg %p32
      $region38: #{double_conv_forward.1} parent=35 // pred_check_branch
        %205 = sbr.rel (%p203) target = $region40
      $region39: #{double_conv_forward.1} parent=35 // pred_region
        %p206 = scmp.lt.s32.totalorder %s12, 1
        %s207 = scalar_select %p206, %s12, 1
        %s208 = smul.addr %s207, 2
        %s209 = smul.addr %s208, 4
        %s210 = scalar_lea.vmem %s0, %s209
      $region40: #{double_conv_forward.1} parent=35 // pred_fallthru
        _
    $region36: #{double_conv_forward.1} parent=5 // pred_fallthru
      _
    %p211 = scmp.le.s32.totalorder 1, %s12
    %p212 = scmp.lt.s32.totalorder %s12, 3
    %p213 = pnand %p211, %p212
    %p214 = pneg %p213
    // Predicated region
    $region41: #{double_conv_forward.1} parent=5 // pred_check
      _
    $region42: #{double_conv_forward.1} parent=5 // pred_check_branch
      %216 = sbr.rel (%p213) target = $region44
    $region43: #{double_conv_forward.1} parent=5 // pred_region
      %s217 = ssub.s32 %s12, 1
      %p218 = scmp.lt.s32.totalorder %s17, 1
      %s219 = scalar_select %p218, %s17, 1
      %s220 = smul.addr %s219, 2
      %s221 = smul.addr %s220, 4
      %s222 = scalar_lea.vmem %s0, %s221
      %p223 = pneg %p38
      %p224 = pneg %p35
      %p225 = pneg %p59
      %p226 = pneg %p56
      %p227 = pneg %p80
      %p228 = pneg %p77
      %p229 = pneg %p101
      %p230 = pneg %p98
      %p231 = pneg %p122
      %p232 = pneg %p119
      %p233 = pneg %p143
      %p234 = pneg %p140
      %p235 = pneg %p169
      %p236 = pneg %p166
      %p237 = scmp.lt.s32.totalorder %s17, 1
      %s238 = scalar_select %p237, %s17, 1
      %s239 = smul.addr %s238, 2
      %s240 = smul.addr %s239, 8
      %s241 = scalar_lea.vmem %s6, %s240
      %p242 = scmp.lt.s32.totalorder %s17, 1
      %s243 = scalar_select %p242, %s17, 1
      %s244 = smul.addr %s243, 2
      %s245 = smul.addr %s244, 4
      %s246 = scalar_lea.vmem %s0, %s245
      %p247 = scmp.lt.s32.totalorder %s17, 1
      %s248 = scalar_select %p247, %s17, 1
      %s249 = smul.addr %s248, 2
      %s250 = smul.addr %s249, 8
      %s251 = scalar_lea.vmem %s6, %s250
      %v252 = vld [vmem:[%s246] sm:$0xff]
      %v253 = vld [vmem:[%s1] sm:$0xff]
      %v254 = vld [vmem:[%s1 + $0x8] sm:$0xff]
      %v255 = vld [vmem:[%s1 + $0x10] sm:$0x1]
      %v256 = vld [vmem:[%s1 + $0x18] sm:$0x1]
      %v258 = vcombine.high %v252, %v252
      %260 = vrot.lane.b32.xlu0 %v252, 17
      %v261 = vpop.permute.xlu0 %260
      %262 = vrot.lane.b32.xlu0 %v258, 17
      %v263 = vpop.permute.xlu0 %262
      %v264 = vlaneseq
      %v265 = vand.u32 %v264, 127
      %vm266 = vcmp.lt.s32.totalorder %v265, 17
      %v267 = vsel %vm266, %v261, %v263
      %v268 = vsel %vm266, %v263, %v261
      %v269 = vlaneseq
      %v270 = vshrl.u32 %v269, 7
      %v271 = vsub.s32 0, %v270
      %v272 = vrot.slane %v253, %v271
      %v273 = vlaneseq
      %v274 = vshrl.u32 %v273, 7
      %v275 = vsub.s32 0, %v274
      %v276 = vrot.slane %v254, %v275
      %v277 = vmul.f32 %v268, %v272
      %v278 = vmul.f32 %v267, %v276
      %279 = vrot.lane.b32.xlu0 %v252, 16
      %v280 = vpop.permute.xlu0 %279
      %281 = vrot.lane.b32.xlu0 %v258, 16
      %v282 = vpop.permute.xlu0 %281
      %vm283 = vcmp.lt.s32.totalorder %v265, 16
      %v284 = vsel %vm283, %v280, %v282
      %v285 = vsel %vm283, %v282, %v280
      %v286 = vlaneseq
      %v287 = vshrl.u32 %v286, 7
      %v288 = vsub.s32 1, %v287
      %v289 = vrot.slane %v253, %v288
      %v290 = vlaneseq
      %v291 = vshrl.u32 %v290, 7
      %v292 = vsub.s32 1, %v291
      %v293 = vrot.slane %v254, %v292
      %v294 = vmul.f32 %v285, %v289
      %v295 = vmul.f32 %v284, %v293
      %296 = vrot.lane.b32.xlu0 %v252, 15
      %v297 = vpop.permute.xlu0 %296
      %298 = vrot.lane.b32.xlu0 %v258, 15
      %v299 = vpop.permute.xlu0 %298
      %vm300 = vcmp.lt.s32.totalorder %v265, 15
      %v301 = vsel %vm300, %v297, %v299
      %v302 = vsel %vm300, %v299, %v297
      %v303 = vlaneseq
      %v304 = vshrl.u32 %v303, 7
      %v305 = vsub.s32 2, %v304
      %v306 = vrot.slane %v253, %v305
      %v307 = vlaneseq
      %v308 = vshrl.u32 %v307, 7
      %v309 = vsub.s32 2, %v308
      %v310 = vrot.slane %v254, %v309
      %v311 = vmul.f32 %v302, %v306
      %v312 = vmul.f32 %v301, %v310
      %313 = vrot.lane.b32.xlu0 %v252, 1
      %v314 = vpop.permute.xlu0 %313
      %315 = vrot.lane.b32.xlu0 %v258, 1
      %v316 = vpop.permute.xlu0 %315
      %vm317 = vcmp.lt.s32.totalorder %v265, 1
      %v318 = vsel %vm317, %v314, %v316
      %v319 = vsel %vm317, %v316, %v314
      %v320 = vlaneseq
      %v321 = vshrl.u32 %v320, 7
      %v322 = vsub.s32 3, %v321
      %v323 = vrot.slane %v253, %v322
      %v324 = vlaneseq
      %v325 = vshrl.u32 %v324, 7
      %v326 = vsub.s32 3, %v325
      %v327 = vrot.slane %v254, %v326
      %v328 = vmul.f32 %v319, %v323
      %v329 = vmul.f32 %v318, %v327
      %330 = vrot.lane.b32.xlu0 %v252, 127
      %v331 = vpop.permute.xlu0 %330
      %332 = vrot.lane.b32.xlu0 %v258, 127
      %v333 = vpop.permute.xlu0 %332
      %vm334 = vcmp.lt.s32.totalorder %v265, 127
      %v335 = vsel %vm334, %v331, %v333
      %v336 = vsel %vm334, %v333, %v331
      %v337 = vlaneseq
      %v338 = vshrl.u32 %v337, 7
      %v339 = vsub.s32 5, %v338
      %v340 = vrot.slane %v253, %v339
      %v341 = vlaneseq
      %v342 = vshrl.u32 %v341, 7
      %v343 = vsub.s32 5, %v342
      %v344 = vrot.slane %v254, %v343
      %v345 = vmul.f32 %v335, %v340
      %v346 = vmul.f32 %v336, %v344
      %347 = vrot.lane.b32.xlu0 %v252, 113
      %v348 = vpop.permute.xlu0 %347
      %349 = vrot.lane.b32.xlu0 %v258, 113
      %v350 = vpop.permute.xlu0 %349
      %vm351 = vcmp.lt.s32.totalorder %v265, 113
      %v352 = vsel %vm351, %v348, %v350
      %v353 = vsel %vm351, %v350, %v348
      %v354 = vlaneseq
      %v355 = vshrl.u32 %v354, 7
      %v356 = vsub.s32 6, %v355
      %v357 = vrot.slane %v253, %v356
      %v358 = vlaneseq
      %v359 = vshrl.u32 %v358, 7
      %v360 = vsub.s32 6, %v359
      %v361 = vrot.slane %v254, %v360
      %v362 = vmul.f32 %v352, %v357
      %v363 = vmul.f32 %v353, %v361
      %364 = vrot.lane.b32.xlu0 %v252, 112
      %v365 = vpop.permute.xlu0 %364
      %366 = vrot.lane.b32.xlu0 %v258, 112
      %v367 = vpop.permute.xlu0 %366
      %vm368 = vcmp.lt.s32.totalorder %v265, 112
      %v369 = vsel %vm368, %v365, %v367
      %v370 = vsel %vm368, %v367, %v365
      %v371 = vlaneseq
      %v372 = vshrl.u32 %v371, 7
      %v373 = vsub.s32 7, %v372
      %v374 = vrot.slane %v253, %v373
      %v375 = vlaneseq
      %v376 = vshrl.u32 %v375, 7
      %v377 = vsub.s32 7, %v376
      %v378 = vrot.slane %v254, %v377
      %v379 = vmul.f32 %v369, %v374
      %v380 = vmul.f32 %v370, %v378
      %381 = vrot.lane.b32.xlu0 %v252, 111
      %v382 = vpop.permute.xlu0 %381
      %383 = vrot.lane.b32.xlu0 %v258, 111
      %v384 = vpop.permute.xlu0 %383
      %vm385 = vcmp.lt.s32.totalorder %v265, 111
      %v386 = vsel %vm385, %v382, %v384
      %v387 = vsel %vm385, %v384, %v382
      %v388 = vlaneseq
      %v389 = vshrl.u32 %v388, 7
      %v390 = vsub.s32 0, %v389
      %v391 = vrot.slane %v255, %v390
      %v392 = vlaneseq
      %v393 = vshrl.u32 %v392, 7
      %v394 = vsub.s32 0, %v393
      %v395 = vrot.slane %v256, %v394
      %v396 = vmul.f32 %v386, %v391
      %v397 = vmul.f32 %v387, %v395
      %v400 = vrot.slane %v294, 4
      %v401 = vrot.slane %v295, 4
      %v406 = vrot.slane %v328, 4
      %v407 = vrot.slane %v329, 4
      %v412 = vrot.slane %v345, 4
      %v413 = vrot.slane %v346, 4
      %v418 = vrot.slane %v379, 4
      %v419 = vrot.slane %v380, 4
      %vm422 = vcmask 1043456
      %v423 = vsel %vm422, %v277, %v400
      %v424 = vsel %vm422, %v278, %v401
      %v425 = vsel %vm422, %v311, %v406
      %v426 = vsel %vm422, %v312, %v407
      %v427 = vsel %vm422, %v252, %v412
      %v428 = vsel %vm422, %v258, %v413
      %v429 = vsel %vm422, %v362, %v418
      %v430 = vsel %vm422, %v363, %v419
      %v431 = vld [vmem:[%s2] sm:$0xff]
      %v432 = vld [vmem:[%s3] sm:$0xff]
      %434 = vset.pattern.permute.xlu0 0
      %435 = vperm.xlu0 %434, %v432
      %v436 = vpop.permute.xlu0 %435
      %vm438 = vcmask 293888
      %v440 = vsel %vm438, %v431, 0
      %v443 = vsel %vm422, %v396, 0
      %v446 = vsel %vm422, %v397, 0
      %448 = vmatprep.subr.mxu0 %v424
      %449 = vmatpush1.msra.mxu0 %v423
      %450 = vmatprep.subr.mxu0 %v426
      %451 = vmatpush1.msra.mxu0 %v425
      %452 = vmatprep.subr.mxu0 %v428
      %453 = vmatpush1.msra.mxu0 %v427
      %454 = vmatprep.subr.mxu0 %v430
      %455 = vmatpush1.msra.mxu0 %v429
      %456 = vmatprep.subr.mxu0 %v446
      %457 = vmatpush1.msra.mxu0 %v443
      %458 = vmatprep.subr.mxu0 0.0
      %459 = vmatpush1.msra.mxu0 0.0
      %460 = vmatprep.subr.mxu0 0.0
      %461 = vmatpush1.msra.mxu0 0.0
      %462 = vmatprep.subr.mxu0 0.0
      %463 = vmatpush1.msra.mxu0 0.0
      %464 = vmatprep.subr.mxu0 0.0
      %465 = vmatpush1.msra.mxu0 0.0
      %466 = vmatprep.subr.mxu0 0.0
      %467 = vmatpush1.msra.mxu0 0.0
      %468 = vmatprep.subr.mxu0 0.0
      %469 = vmatpush1.msra.mxu0 0.0
      %470 = vmatprep.subr.mxu0 0.0
      %471 = vmatpush1.msra.mxu0 0.0
      %472 = vmatprep.subr.mxu0 0.0
      %473 = vmatpush1.msra.mxu0 0.0
      %474 = vmatprep.subr.mxu0 0.0
      %475 = vmatpush1.msra.mxu0 0.0
      %476 = vmatprep.subr.mxu0 0.0
      %477 = vmatpush1.msra.mxu0 0.0
      %478 = vmatprep.subr.mxu0 0.0
      %479 = vmatpush1.msra.mxu0 0.0
      %480 = vmatprep.subr.mxu0 0.0
      %481 = vmatpush1.msra.mxu0 0.0
      %482 = vmatprep.subr.mxu0 0.0
      %483 = vmatpush1.msra.mxu0 0.0
      %484 = vmatprep.subr.mxu0 0.0
      %485 = vmatpush1.msra.mxu0 0.0
      %486 = vmatprep.subr.mxu0 0.0
      %487 = vmatpush1.msra.mxu0 0.0
      %488 = vmatprep.subr.mxu0 0.0
      %489 = vmatpush1.msra.mxu0 0.0
      %490 = vmatprep.subr.mxu0 0.0
      %491 = vmatpush1.msra.mxu0 0.0
      %492 = vmatprep.subr.mxu0 0.0
      %493 = vmatpush1.msra.mxu0 0.0
      %494 = vmatprep.subr.mxu0 0.0
      %495 = vmatpush1.msra.mxu0 0.0
      %496 = vmatprep.subr.mxu0 0.0
      %497 = vmatpush1.msra.mxu0 0.0
      %498 = vmatprep.subr.mxu0 0.0
      %499 = vmatpush1.msra.mxu0 0.0
      %500 = vmatprep.subr.mxu0 0.0
      %501 = vmatpush1.msra.mxu0 0.0
      %502 = vmatprep.subr.mxu0 0.0
      %503 = vmatpush1.msra.mxu0 0.0
      %504 = vmatprep.subr.mxu0 0.0
      %505 = vmatpush1.msra.mxu0 0.0
      %506 = vmatprep.subr.mxu0 0.0
      %507 = vmatpush1.msra.mxu0 0.0
      %508 = vmatprep.subr.mxu0 0.0
      %509 = vmatpush1.msra.mxu0 0.0
      %510 = vmatprep.subr.mxu0 0.0
      %511 = vmatpush1.msra.mxu0 0.0
      %512 = vmatprep.mubr.f32.mxu0 0.0
      %513 = vmatmul.mubr.f32.gmra.mrb[0].mxu0 %v440
      %v514 = vpop.f32.mrb[0].mxu0
      %v515 = vadd.f32 %v436, %v514
      %v516 = vpop.f32.mrb[0].mxu0
      %v517 = vadd.f32 %v436, %v516
      %518 = vdwg.mxu0
      %v519 = vmax.f32 %v515, 0.0
      %v520 = vmax.f32 %v517, 0.0
      %521 = vrot.lane.b32.xlu0 %v519, 17
      %v522 = vpop.permute.xlu0 %521
      %523 = vrot.lane.b32.xlu0 %v520, 17
      %v524 = vpop.permute.xlu0 %523
      %v525 = vsel %vm266, %v522, %v524
      %v526 = vsel %vm266, %v524, %v522
      %v527 = vmul.f32 %v526, %v272
      %v528 = vmul.f32 %v525, %v276
      %529 = vrot.lane.b32.xlu0 %v519, 16
      %v530 = vpop.permute.xlu0 %529
      %531 = vrot.lane.b32.xlu0 %v520, 16
      %v532 = vpop.permute.xlu0 %531
      %v533 = vsel %vm283, %v530, %v532
      %v534 = vsel %vm283, %v532, %v530
      %v535 = vmul.f32 %v534, %v289
      %v536 = vmul.f32 %v533, %v293
      %537 = vrot.lane.b32.xlu0 %v519, 15
      %v538 = vpop.permute.xlu0 %537
      %539 = vrot.lane.b32.xlu0 %v520, 15
      %v540 = vpop.permute.xlu0 %539
      %v541 = vsel %vm300, %v538, %v540
      %v542 = vsel %vm300, %v540, %v538
      %v543 = vmul.f32 %v542, %v306
      %v544 = vmul.f32 %v541, %v310
      %545 = vrot.lane.b32.xlu0 %v519, 1
      %v546 = vpop.permute.xlu0 %545
      %547 = vrot.lane.b32.xlu0 %v520, 1
      %v548 = vpop.permute.xlu0 %547
      %v549 = vsel %vm317, %v546, %v548
      %v550 = vsel %vm317, %v548, %v546
      %v551 = vmul.f32 %v550, %v323
      %v552 = vmul.f32 %v549, %v327
      %553 = vrot.lane.b32.xlu0 %v519, 127
      %v554 = vpop.permute.xlu0 %553
      %555 = vrot.lane.b32.xlu0 %v520, 127
      %v556 = vpop.permute.xlu0 %555
      %v557 = vsel %vm334, %v554, %v556
      %v558 = vsel %vm334, %v556, %v554
      %v559 = vmul.f32 %v557, %v340
      %v560 = vmul.f32 %v558, %v344
      %561 = vrot.lane.b32.xlu0 %v519, 113
      %v562 = vpop.permute.xlu0 %561
      %563 = vrot.lane.b32.xlu0 %v520, 113
      %v564 = vpop.permute.xlu0 %563
      %v565 = vsel %vm351, %v562, %v564
      %v566 = vsel %vm351, %v564, %v562
      %v567 = vmul.f32 %v565, %v357
      %v568 = vmul.f32 %v566, %v361
      %569 = vrot.lane.b32.xlu0 %v519, 112
      %v570 = vpop.permute.xlu0 %569
      %571 = vrot.lane.b32.xlu0 %v520, 112
      %v572 = vpop.permute.xlu0 %571
      %v573 = vsel %vm368, %v570, %v572
      %v574 = vsel %vm368, %v572, %v570
      %v575 = vmul.f32 %v573, %v374
      %v576 = vmul.f32 %v574, %v378
      %577 = vrot.lane.b32.xlu0 %v519, 111
      %v578 = vpop.permute.xlu0 %577
      %579 = vrot.lane.b32.xlu0 %v520, 111
      %v580 = vpop.permute.xlu0 %579
      %v581 = vsel %vm385, %v578, %v580
      %v582 = vsel %vm385, %v580, %v578
      %v583 = vmul.f32 %v581, %v391
      %v584 = vmul.f32 %v582, %v395
      %v585 = vld [vmem:[%s4] sm:$0xff]
      %v586 = vld [vmem:[%s5] sm:$0xff]
      %588 = vset.pattern.permute.xlu0 0
      %589 = vperm.xlu0 %588, %v586
      %v590 = vpop.permute.xlu0 %589
      %vm592 = vcmask 588800
      %v594 = vsel %vm592, %v585, 0
      %596 = vmatprep.subr.mxu0 %v528
      %597 = vmatpush1.msra.mxu0 %v527
      %598 = vmatprep.subr.mxu0 %v536
      %599 = vmatpush1.msra.mxu0 %v535
      %600 = vmatprep.subr.mxu0 %v544
      %601 = vmatpush1.msra.mxu0 %v543
      %602 = vmatprep.subr.mxu0 %v552
      %603 = vmatpush1.msra.mxu0 %v551
      %604 = vmatprep.subr.mxu0 %v520
      %605 = vmatpush1.msra.mxu0 %v519
      %606 = vmatprep.subr.mxu0 %v560
      %607 = vmatpush1.msra.mxu0 %v559
      %608 = vmatprep.subr.mxu0 %v568
      %609 = vmatpush1.msra.mxu0 %v567
      %610 = vmatprep.subr.mxu0 %v576
      %611 = vmatpush1.msra.mxu0 %v575
      %612 = vmatprep.subr.mxu0 %v584
      %613 = vmatpush1.msra.mxu0 %v583
      %614 = vmatprep.subr.mxu0 0.0
      %615 = vmatpush1.msra.mxu0 0.0
      %616 = vmatprep.subr.mxu0 0.0
      %617 = vmatpush1.msra.mxu0 0.0
      %618 = vmatprep.subr.mxu0 0.0
      %619 = vmatpush1.msra.mxu0 0.0
      %620 = vmatprep.subr.mxu0 0.0
      %621 = vmatpush1.msra.mxu0 0.0
      %622 = vmatprep.subr.mxu0 0.0
      %623 = vmatpush1.msra.mxu0 0.0
      %624 = vmatprep.subr.mxu0 0.0
      %625 = vmatpush1.msra.mxu0 0.0
      %626 = vmatprep.subr.mxu0 0.0
      %627 = vmatpush1.msra.mxu0 0.0
      %628 = vmatprep.subr.mxu0 0.0
      %629 = vmatpush1.msra.mxu0 0.0
      %630 = vmatprep.subr.mxu0 0.0
      %631 = vmatpush1.msra.mxu0 0.0
      %632 = vmatprep.subr.mxu0 0.0
      %633 = vmatpush1.msra.mxu0 0.0
      %634 = vmatprep.subr.mxu0 0.0
      %635 = vmatpush1.msra.mxu0 0.0
      %636 = vmatprep.subr.mxu0 0.0
      %637 = vmatpush1.msra.mxu0 0.0
      %638 = vmatprep.subr.mxu0 0.0
      %639 = vmatpush1.msra.mxu0 0.0
      %640 = vmatprep.subr.mxu0 0.0
      %641 = vmatpush1.msra.mxu0 0.0
      %642 = vmatprep.subr.mxu0 0.0
      %643 = vmatpush1.msra.mxu0 0.0
      %644 = vmatprep.subr.mxu0 0.0
      %645 = vmatpush1.msra.mxu0 0.0
      %646 = vmatprep.subr.mxu0 0.0
      %647 = vmatpush1.msra.mxu0 0.0
      %648 = vmatprep.subr.mxu0 0.0
      %649 = vmatpush1.msra.mxu0 0.0
      %650 = vmatprep.subr.mxu0 0.0
      %651 = vmatpush1.msra.mxu0 0.0
      %652 = vmatprep.subr.mxu0 0.0
      %653 = vmatpush1.msra.mxu0 0.0
      %654 = vmatprep.subr.mxu0 0.0
      %655 = vmatpush1.msra.mxu0 0.0
      %656 = vmatprep.subr.mxu0 0.0
      %657 = vmatpush1.msra.mxu0 0.0
      %658 = vmatprep.subr.mxu0 0.0
      %659 = vmatpush1.msra.mxu0 0.0
      %660 = vmatprep.mubr.f32.mxu0 0.0
      %661 = vmatmul.mubr.f32.gmra.mrb[0].mxu0 %v594
      %v662 = vpop.f32.mrb[0].mxu0
      %v663 = vadd.f32 %v590, %v662
      %v664 = vpop.f32.mrb[0].mxu0
      %v665 = vadd.f32 %v590, %v664
      %666 = vdwg.mxu0
      %v667 = vmax.f32 %v663, 0.0
      %v668 = vmax.f32 %v665, 0.0
      %669 = vst [vmem:[%s251] sm:$0xff] %v667
      %670 = vst [vmem:[%s251 + $0x8] sm:$0xff] %v668
      %p671 = scmp.lt.s32.totalorder %s17, 1
      %s672 = scalar_select %p671, %s17, 1
      %s673 = smul.addr %s672, 2
      %s674 = smul.addr %s673, 8
      %s675 = scalar_lea.vmem %s6, %s674
      // Predicated region
      $region45: #{double_conv_forward.1} parent=43 // pred_check
        %p676 = pneg %p166
      $region46: #{double_conv_forward.1} parent=43 // pred_check_branch
        %678 = sbr.rel (%p676) target = $region48
      $region47: #{double_conv_forward.1} parent=43 // pred_region
        _
      $region48: #{double_conv_forward.1} parent=43 // pred_fallthru
        _
    $region44: #{double_conv_forward.1} parent=5 // pred_fallthru
      _
    %p679 = scmp.le.s32.totalorder 2, %s12
    // Predicated region
    $region49: #{double_conv_forward.1} parent=5 // pred_check
      %p680 = pneg %p679
    $region50: #{double_conv_forward.1} parent=5 // pred_check_branch
      %682 = sbr.rel (%p680) target = $region52
    $region51: #{double_conv_forward.1} parent=5 // pred_region
      %s683 = ssub.s32 %s12, 2
      // Predicated region
      $region53: #{double_conv_forward.1} parent=51 // pred_check
        %p684 = pneg %p172
      $region54: #{double_conv_forward.1} parent=51 // pred_check_branch
        %686 = sbr.rel (%p684) target = $region56
      $region55: #{double_conv_forward.1} parent=51 // pred_region
        %p687 = scmp.lt.s32.totalorder %s18, 1
        %s688 = scalar_select %p687, %s18, 1
        %s689 = smul.addr %s688, 2
        %s690 = smul.addr %s689, 8
        %s691 = scalar_lea.vmem %s6, %s690
      $region56: #{double_conv_forward.1} parent=51 // pred_fallthru
        _
    $region52: #{double_conv_forward.1} parent=5 // pred_fallthru
      _
  $region6: #{double_conv_forward.1} parent=0 // loop_footer
    %s16 = sadd.s32 1, %s12
  $region7: #{double_conv_forward.1} parent=0 // loop_footer_branch
    %11 = sbr.rel target = $region3
  $region8: #{double_conv_forward.1} parent=0 // loop_exit
    _

</llo_original>
